<compile_context>
chip_gen: v7x
topology: tpu7x:2x2x1
jax: 0.10.0
libtpu: 0.0.40
codegen_flags: <defaults>
</compile_context>

<pallas_src>
import functools

import jax
import jax.numpy as jnp
import numpy as np
from jax.experimental import pallas as pl
from jax.experimental.pallas import tpu as pltpu

_LANE = 128
_SUBLANE = 8
_FUSED_VMEM_BUDGET = 24 * 1024 * 1024    # working-set bound for the fused path
_TWO_PASS_BLOCK_BYTES = 4 * 1024 * 1024  # per-block tile budget in the fallback
_VMEM_LIMIT_BYTES = 30 * 1024 * 1024     # < v7x's 32 MiB scoped default / 64 MiB phys


# -----------------------------------------------------------------------------
# Fused single-pass kernel: pool -> channel conv -> sigmoid -> scale, one batch
# element ((1, C, HW) slab) resident in VMEM per grid step.
# -----------------------------------------------------------------------------
def _fused_eca_kernel(band_ref, x_ref, o_ref, acc_ref, *, inv_hw, hw, chunked):
    """band_ref: (C, C) f32   banded conv matrix  band[c, c'] = w[c' - c + pad]
    x_ref:    (1, C, HW)   input slab (native dtype)
    o_ref:    (1, C, HW)   output slab
    acc_ref:  (1, C, 128)  f32 scratch: lane-wise partial sums (VPU adds only)
    """
    if chunked:
        # Accumulate 128-lane slices with VALU adds; a single cross-lane reduce
        # happens after the matmul (keeps the XLU out of the hot loop and avoids
        # materialising an f32 copy of the whole slab for 16-bit inputs).
        acc_ref[...] = jnp.zeros_like(acc_ref)

        @pl.loop(0, hw // _LANE)
        def _(j):
            off = pl.multiple_of(j * _LANE, _LANE)
            acc_ref[...] += x_ref[:, :, pl.ds(off, _LANE)].astype(jnp.float32)

        # (C, C) @ (C, 128) on the MXU, then one lane reduce -> (C, 1).
        y = jnp.dot(band_ref[...], acc_ref[0], preferred_element_type=jnp.float32)
        y = jnp.sum(y, axis=-1, keepdims=True) * inv_hw
    else:
        # Ragged HW (not a multiple of 128): plain keepdims reduce.
        psum = jnp.sum(x_ref[...].astype(jnp.float32), axis=-1, keepdims=True)
        y = jnp.dot(band_ref[...], psum[0], preferred_element_type=jnp.float32) * inv_hw

    scale = jax.nn.sigmoid(y)[None]                       # (1, C, 1) f32
    x = x_ref[...]
    o_ref[...] = (x * scale.astype(x.dtype)).astype(o_ref.dtype)


# -----------------------------------------------------------------------------
# Two-pass tiled fallback (huge feature maps): row layout (B*C, HW).
# -----------------------------------------------------------------------------
def _pool_sum_kernel(x_ref, sum_ref, acc_ref, *, lanes_per_tile):
    """Pass 1: per-row (= per (b, c)) spatial sums, tiled over the lane axis.

    x_ref:   (R, T)   one tile (native dtype)
    sum_ref: (R, 1)   f32 per-row spatial sum (written on the last tile)
    acc_ref: (R, 128) f32 lane-wise running partial sums
    """
    t = pl.program_id(1)

    @pl.when(t == 0)
    def _init():
        acc_ref[...] = jnp.zeros_like(acc_ref)

    @pl.loop(0, lanes_per_tile)
    def _(j):
        off = pl.multiple_of(j * _LANE, _LANE)
        acc_ref[...] += x_ref[:, pl.ds(off, _LANE)].astype(jnp.float32)

    @pl.when(t == pl.num_programs(1) - 1)
    def _finalize():
        sum_ref[...] = jnp.sum(acc_ref[...], axis=-1, keepdims=True)


def _scale_rows_kernel(x_ref, s_ref, o_ref):
    """Pass 2: out = x * scale for one (R, T) tile; per-row scale is (R, 1)."""
    x = x_ref[...]
    o_ref[...] = (x * s_ref[...].astype(x.dtype)).astype(o_ref.dtype)


def _pick_row_col_tiles(n_rows, n_cols, itemsize,
                        block_bytes=_TWO_PASS_BLOCK_BYTES, row_cap=64):
    """Pick an (R, T) tile: R a multiple of 8 dividing n_rows (sublane dense,
    modest so several row-blocks exist for megacore), T the largest multiple of
    128 dividing n_cols with R*T*itemsize <= block_bytes (lane dense)."""
    if n_rows % _SUBLANE == 0:
        rows = _SUBLANE
        for r in range(_SUBLANE, min(n_rows, row_cap) + 1, _SUBLANE):
            if n_rows % r == 0:
                rows = r
    else:
        rows = n_rows                       # small / odd B*C: full extent
    col_cap = max(_LANE, (block_bytes // max(1, rows * itemsize)) // _LANE * _LANE)
    col_cap = min(col_cap, n_cols)
    cols = _LANE
    for c in range(_LANE, col_cap + 1, _LANE):
        if n_cols % c == 0:
            cols = c
    return rows, cols


def _eca_forward(x, conv_w, *, force_two_pass=False):
    B, C, H, W = x.shape
    HW = H * W
    BC = B * C
    dtype = x.dtype
    itemsize = jnp.dtype(dtype).itemsize

    w = conv_w.reshape(-1).astype(jnp.float32)            # Conv1d(1,1,k) taps
    k = w.shape[0]
    assert k % 2 == 1, "ECA uses odd kernel sizes (padding=(k-1)//2 only length-preserving for odd k)"
    pad = (k - 1) // 2
    inv_hw = 1.0 / HW

    # ---------------- fused single-pass path ----------------
    slab_bytes = C * HW * itemsize
    band_bytes = C * C * 4
    extra_f32_tmp = 0 if (HW % _LANE == 0 or itemsize == 4) else C * HW * 4
    fused_working_set = 4 * slab_bytes + 2 * band_bytes + C * _LANE * 4 + extra_f32_tmp
    use_fused = (not force_two_pass
                 and fused_working_set <= _FUSED_VMEM_BUDGET
                 # building/streaming the (C, C) band matrix must stay well
                 # below the HBM read of x that fusion saves
                 and 3 * C <= B * HW)

    if use_fused:
        x3 = x.reshape(B, C, HW)
        # Banded conv matrix built once in XLA from the k taps (tiny).
        ch = jnp.arange(C, dtype=jnp.int32)
        diff = ch[None, :] - ch[:, None]                  # diff[c, c'] = c' - c
        band = jnp.zeros((C, C), jnp.float32)
        for j in range(k):                                # k is tiny (3 or 5)
            band = jnp.where(diff == (j - pad), w[j], band)

        out3 = pl.pallas_call(
            functools.partial(_fused_eca_kernel, inv_hw=inv_hw, hw=HW,
                              chunked=(HW % _LANE == 0)),
            out_shape=jax.ShapeDtypeStruct((B, C, HW), dtype),
            grid_spec=pltpu.PrefetchScalarGridSpec(
                num_scalar_prefetch=0,
                grid=(B,),
                in_specs=[
                    pl.BlockSpec((C, C), lambda b: (0, 0)),        # fetched once
                    pl.BlockSpec((1, C, HW), lambda b: (b, 0, 0)),
                ],
                out_specs=pl.BlockSpec((1, C, HW), lambda b: (b, 0, 0)),
                scratch_shapes=[pltpu.VMEM((1, C, _LANE), jnp.float32)],
            ),
            compiler_params=pltpu.CompilerParams(
                dimension_semantics=("parallel",),
                vmem_limit_bytes=_VMEM_LIMIT_BYTES),
        )(band, x3)
        return out3.reshape(B, C, H, W)

    # ---------------- two-pass tiled fallback ----------------
    x2 = x.reshape(BC, HW)
    HWp = HW if HW % _LANE == 0 else ((HW + _LANE - 1) // _LANE) * _LANE
    if HWp != HW:
        # Rare on the large-HW shapes that reach this path; zero padding keeps
        # the pooled sums exact and the padded tail is sliced off below.
        x2 = jnp.pad(x2, ((0, 0), (0, HWp - HW)))
    R, T = _pick_row_col_tiles(BC, HWp, itemsize)

    # Pass 1: per-row spatial sums.
    sums = pl.pallas_call(
        functools.partial(_pool_sum_kernel, lanes_per_tile=T // _LANE),
        out_shape=jax.ShapeDtypeStruct((BC, 1), jnp.float32),
        grid_spec=pltpu.PrefetchScalarGridSpec(
            num_scalar_prefetch=0,
            grid=(BC // R, HWp // T),
            in_specs=[pl.BlockSpec((R, T), lambda r, t: (r, t))],
            out_specs=pl.BlockSpec((R, 1), lambda r, t: (r, 0)),
            scratch_shapes=[pltpu.VMEM((R, _LANE), jnp.float32)],
        ),
        compiler_params=pltpu.CompilerParams(
            dimension_semantics=("parallel", "arbitrary"),
            vmem_limit_bytes=_VMEM_LIMIT_BYTES),
    )(x2)

    # Tiny k-tap channel conv + sigmoid on the (B, C) pooled means in plain XLA
    # (negligible work; keeps pass 1 free of cross-channel coupling and avoids
    # any lanes<->sublanes transpose between the two pallas_calls).
    pooled = sums.reshape(B, C) * inv_hw
    pp = jnp.pad(pooled, ((0, 0), (pad, pad)))
    yy = jnp.zeros_like(pooled)
    for j in range(k):
        yy = yy + w[j] * pp[:, j:j + C]
    scale_rows = jax.nn.sigmoid(yy).reshape(BC, 1)         # f32, one value per row

    # Pass 2: out = x * scale, fully parallel lane-dense tiles.
    out2 = pl.pallas_call(
        _scale_rows_kernel,
        out_shape=jax.ShapeDtypeStruct((BC, HWp), dtype),
        grid_spec=pltpu.PrefetchScalarGridSpec(
            num_scalar_prefetch=0,
            grid=(BC // R, HWp // T),
            in_specs=[pl.BlockSpec((R, T), lambda r, t: (r, t)),
                      pl.BlockSpec((R, 1), lambda r, t: (r, 0))],
            out_specs=pl.BlockSpec((R, T), lambda r, t: (r, t)),
        ),
        compiler_params=pltpu.CompilerParams(
            dimension_semantics=("parallel", "parallel"),
            vmem_limit_bytes=_VMEM_LIMIT_BYTES),
    )(x2, scale_rows)

    if HWp != HW:
        out2 = out2[:, :HW]
    return out2.reshape(B, C, H, W)


eca_block = jax.jit(_eca_forward, static_argnames=("force_two_pass",))


def _eca_reference(x, conv_w):
    """Pure-JAX reference mirroring the PyTorch ECABlock forward."""
    B, C, H, W = x.shape
    w = conv_w.reshape(-1).astype(jnp.float32)
    k = w.shape[0]
    pad = (k - 1) // 2
    pooled = jnp.mean(x.astype(jnp.float32), axis=(2, 3))           # (B, C)
    pp = jnp.pad(pooled, ((0, 0), (pad, pad)))                      # zero pad channels
    y = jnp.zeros_like(pooled)
    for j in range(k):
        y = y + w[j] * pp[:, j:j + C]
    scale = jax.nn.sigmoid(y)[:, :, None, None]                     # (B, C, 1, 1)
    return (x.astype(jnp.float32) * scale).astype(x.dtype)


if __name__ == "__main__":
    key = jax.random.PRNGKey(0)
    kx, kw = jax.random.split(key)

    B, C, H, W = 2, 4, 16, 16
    K_SIZE = 3

    x = jax.random.normal(kx, (B, C, H, W), dtype=jnp.float32)
    # Deterministic init of Conv1d(1, 1, 3, bias=False) weight ((1,1,3) -> (3,))
    conv_w = jax.random.normal(kw, (K_SIZE,), dtype=jnp.float32) * 0.5

    ref = _eca_reference(x, conv_w)

    # Default (fused single-pass) path.
    out_fused = jax.block_until_ready(eca_block(x, conv_w))
    assert out_fused.shape == (B, C, H, W)
    assert out_fused.dtype == x.dtype
    assert np.allclose(np.asarray(out_fused), np.asarray(ref), atol=1e-5, rtol=1e-5)

    # Also exercise the tiled two-pass fallback (used when the per-batch slab
    # would not fit in VMEM).
    out_tiled = jax.block_until_ready(eca_block(x, conv_w, force_two_pass=True))
    assert np.allclose(np.asarray(out_tiled), np.asarray(ref), atol=1e-5, rtol=1e-5)

    print("KERNEL_OK")
</pallas_src>

<mosaic_0001>
module attributes {stable_mosaic.version = 11 : i64} {
  func.func @_fused_eca_kernel(%arg0: i32, %arg1: memref<4x4xf32, #tpu.memory_space<vmem>>, %arg2: memref<1x4x256xf32, #tpu.memory_space<vmem>>, %arg3: memref<1x4x256xf32, #tpu.memory_space<vmem>>, %arg4: memref<1x4x128xf32, #tpu.memory_space<vmem>>) attributes {dimension_semantics = [#tpu.dimension_semantics<parallel>], iteration_bounds = array<i64: 2>, scalar_prefetch = 0 : i64, scratch_operands = 1 : i64, tpu.core_type = #tpu.core_type<tc>, window_params = [{pipeline_mode = #tpu.pipeline_mode<synchronous>, transform_indices = @transform_0, window_bounds = array<i64: 4, 4>}, {transform_indices = @transform_1, window_bounds = array<i64: 1, 4, 256>}, {transform_indices = @transform_2, window_bounds = array<i64: 1, 4, 256>}]} {
    %cst = arith.constant 0.000000e+00 : f32
    %0 = vector.broadcast %cst : f32 to vector<1x4x128xf32>
    %c0 = arith.constant 0 : index
    %c0_0 = arith.constant 0 : index
    %c0_1 = arith.constant 0 : index
    %1 = vector.load %arg4[%c0, %c0_0, %c0_1] : memref<1x4x128xf32, #tpu.memory_space<vmem>>, vector<1x4x128xf32>
    tpu.vector_store %arg4[%c0, %c0_0, %c0_1], %0 {strides = array<i32>} : memref<1x4x128xf32, #tpu.memory_space<vmem>>, vector<1x4x128xf32>,
    %c0_i32 = arith.constant 0 : i32
    %c2_i32 = arith.constant 2 : i32
    %2 = arith.addi %c0_i32, %c2_i32 : i32
    %c1_i32 = arith.constant 1 : i32
    scf.for %arg5 = %c0_i32 to %2 step %c1_i32  : i32 {
      %c1_i32_18 = arith.constant 1 : i32
      %21 = arith.muli %arg5, %c1_i32_18 : i32
      %c0_i32_19 = arith.constant 0 : i32
      %22 = arith.addi %c0_i32_19, %21 : i32
      %c128_i32 = arith.constant 128 : i32
      %23 = arith.muli %22, %c128_i32 : i32
      %24 = tpu.assume_multiple %23, 128 : i32
      %c0_20 = arith.constant 0 : index
      %c0_21 = arith.constant 0 : index
      %c0_22 = arith.constant 0 : index
      %25 = vector.load %arg4[%c0_20, %c0_21, %c0_22] : memref<1x4x128xf32, #tpu.memory_space<vmem>>, vector<1x4x128xf32>
      %c0_23 = arith.constant 0 : index
      %c0_24 = arith.constant 0 : index
      %26 = arith.index_cast %24 : i32 to index
      %27 = vector.load %arg2[%c0_23, %c0_24, %26] : memref<1x4x256xf32, #tpu.memory_space<vmem>>, vector<1x4x128xf32>
      %28 = arith.addf %25, %27 : vector<1x4x128xf32>
      %c0_25 = arith.constant 0 : index
      %c0_26 = arith.constant 0 : index
      %c0_27 = arith.constant 0 : index
      %29 = vector.load %arg4[%c0_25, %c0_26, %c0_27] : memref<1x4x128xf32, #tpu.memory_space<vmem>>, vector<1x4x128xf32>
      tpu.vector_store %arg4[%c0_25, %c0_26, %c0_27], %28 {strides = array<i32>} : memref<1x4x128xf32, #tpu.memory_space<vmem>>, vector<1x4x128xf32>,
    }
    %c2_i32_2 = arith.constant 2 : i32
    %c0_3 = arith.constant 0 : index
    %c0_4 = arith.constant 0 : index
    %3 = vector.load %arg1[%c0_3, %c0_4] : memref<4x4xf32, #tpu.memory_space<vmem>>, vector<4x4xf32>
    %c0_5 = arith.constant 0 : index
    %c0_6 = arith.constant 0 : index
    %c0_7 = arith.constant 0 : index
    %4 = vector.load %arg4[%c0_5, %c0_6, %c0_7] : memref<1x4x128xf32, #tpu.memory_space<vmem>>, vector<1x4x128xf32>
    %5 = vector.shape_cast %4 : vector<1x4x128xf32> to vector<4x128xf32>
    %cst_8 = arith.constant dense<0.000000e+00> : vector<4x128xf32>
    %6 = tpu.matmul %3, %5, %cst_8 {dimension_numbers = #tpu.dot_dimension_numbers<[1], [0], [0], [1], [0, 0, 1, 1], [], []>} : vector<4x4xf32>, vector<4x128xf32>, vector<4x128xf32> -> vector<4x128xf32>
    %cst_9 = arith.constant dense<0.000000e+00> : vector<4xf32>
    %7 = vector.multi_reduction <add>, %6, %cst_9 [1] : vector<4x128xf32> to vector<4xf32>
    %8 = vector.shape_cast %7 : vector<4xf32> to vector<4x1xf32>
    %cst_10 = arith.constant 3.906250e-03 : f32
    %9 = vector.broadcast %cst_10 : f32 to vector<4x1xf32>
    %10 = arith.mulf %8, %9 : vector<4x1xf32>
    %11 = arith.negf %10 : vector<4x1xf32>
    %12 = math.exp %11 : vector<4x1xf32>
    %cst_11 = arith.constant 1.000000e+00 : f32
    %13 = vector.broadcast %cst_11 : f32 to vector<4x1xf32>
    %14 = arith.addf %13, %12 : vector<4x1xf32>
    %15 = arith.divf %13, %14 : vector<4x1xf32>
    %16 = vector.shape_cast %15 : vector<4x1xf32> to vector<1x4x1xf32>
    %c0_12 = arith.constant 0 : index
    %c0_13 = arith.constant 0 : index
    %c0_14 = arith.constant 0 : index
    %17 = vector.load %arg2[%c0_12, %c0_13, %c0_14] : memref<1x4x256xf32, #tpu.memory_space<vmem>>, vector<1x4x256xf32>
    %18 = vector.broadcast %16 : vector<1x4x1xf32> to vector<1x4x256xf32>
    %19 = arith.mulf %17, %18 : vector<1x4x256xf32>
    %c0_15 = arith.constant 0 : index
    %c0_16 = arith.constant 0 : index
    %c0_17 = arith.constant 0 : index
    %20 = vector.load %arg3[%c0_15, %c0_16, %c0_17] : memref<1x4x256xf32, #tpu.memory_space<vmem>>, vector<1x4x256xf32>
    tpu.vector_store %arg3[%c0_15, %c0_16, %c0_17], %19 {strides = array<i32>} : memref<1x4x256xf32, #tpu.memory_space<vmem>>, vector<1x4x256xf32>,
    return
  }
  func.func @transform_0(%arg0: i32) -> (i32, i32) {
    %c0_i32 = arith.constant 0 : i32
    %c0_i32_0 = arith.constant 0 : i32
    %c0_i32_1 = arith.constant 0 : i32
    return %c0_i32, %c0_i32_0 : i32, i32
  }
  func.func @transform_1(%arg0: i32) -> (i32, i32, i32) {
    %c0_i32 = arith.constant 0 : i32
    %c0_i32_0 = arith.constant 0 : i32
    %c0_i32_1 = arith.constant 0 : i32
    return %arg0, %c0_i32, %c0_i32_0 : i32, i32, i32
  }
  func.func @transform_2(%arg0: i32) -> (i32, i32, i32) {
    %c0_i32 = arith.constant 0 : i32
    %c0_i32_0 = arith.constant 0 : i32
    %c0_i32_1 = arith.constant 0 : i32
    return %arg0, %c0_i32, %c0_i32_0 : i32, i32, i32
  }
}

</mosaic_0001>

<llo_original>
// kernel: _eca_forward.1
$region0: #{_eca_forward.1}
  #allocation0 [shape = 'u32[]', space=smem, size = 0x4, offset = 0x4, fixed_abs, tag = 'smem constant byte address 0x4 - core index']
  #allocation1 [shape = 'u32[144,128]{1,0:T(1,128)}', space=vmem, size = 0x12000, scoped, tag = 'internal scratch']
  #allocation2 [shape = 'f32[1,4,128]{2,1,0:T(4,128)}', space=vmem, size = 0x800, scoped, tag = 'scratch operand']
  %s0 = inlined_call_operand.vmem [shape: f32[4,4], index: 0, kind: input, shape index: {}]
  %s1 = inlined_call_operand.vmem [shape: f32[2,4,256], index: 1, kind: input, shape index: {}]
  %s2 = inlined_call_operand.vmem [shape: f32[2,4,256], index: 2, kind: output, shape index: {}]
  %s3 = sld [smem:[#allocation0]]
  $region48: #{_eca_forward.1} parent=0
    _
  %s5 = ssub.s32 1, %s3
  %s6 = scalar_select 0, %s5, %s3
  loop: start=0, step=1, limit=4
  $region2: #{_eca_forward.1} parent=0 // loop_pre_header
    _
  $region3: #{_eca_forward.1} parent=0 // loop_header
    %s8 = sphi 0, %s12
    %p9 = scmp.ge.s32.totalorder %s8, 4
    %s16 = sphi 0, %s16
    %s18 = sphi 0, %s16
    %s19 = sphi 0, %s18
    %s33 = sphi 0, %s19
    %s39 = sphi 0, %s41
    %s42 = sphi 0, %s39
    %s43 = sphi 0, %s42
    %s59 = sphi 0, %s43
    %s65 = sphi 0, %s67
    %s68 = sphi 0, %s65
    %s69 = sphi 0, %s68
    %s85 = sphi 0, %s69
  $region4: #{_eca_forward.1} parent=0 // loop_header_branch
    %11 = sbr.rel (%p9) target = $region8
  $region5: #{_eca_forward.1} parent=0 // loop_body
    %s13 = ssub.s32 %s8, 1
    %s14 = ssub.s32 %s8, 2
    %s15 = sadd.s32 %s8, 1
    %s17 = sadd.s32 %s16, 1
    %p20 = scmp.eq.s32.totalorder %s8, 1
    %p21 = scmp.ne.s32.totalorder %s16, %s18
    %p22 = scmp.eq.s32.totalorder %s8, 0
    %p23 = por %p21, %p22
    %p24 = scmp.ne.s32.totalorder %s16, %s18
    %p25 = scmp.eq.s32.totalorder %s13, 1
    %p26 = por %p24, %p25
    %p27 = scmp.ne.s32.totalorder %s18, %s19
    %p28 = scmp.eq.s32.totalorder %s13, 0
    %p29 = por %p27, %p28
    %p30 = scmp.ne.s32.totalorder %s18, %s19
    %p31 = scmp.eq.s32.totalorder %s14, 1
    %p32 = por %p30, %p31
    %p34 = scmp.ne.s32.totalorder %s19, %s33
    %p35 = scmp.eq.s32.totalorder %s14, 0
    %p36 = por %p34, %p35
    %s37 = ssub.s32 %s8, %s15
    %p38 = scmp.eq.s32.totalorder %s37, 0
    %s40 = sadd.s32 %s39, 1
    %s41 = scalar_select %p38, %s39, %s40
    %p44 = pneg %p38
    %p45 = scmp.eq.s32.totalorder %s8, 1
    %p46 = por %p44, %p45
    %p47 = scmp.ne.s32.totalorder %s39, %s42
    %p48 = scmp.eq.s32.totalorder %s8, 0
    %p49 = por %p47, %p48
    %p50 = scmp.ne.s32.totalorder %s39, %s42
    %p51 = scmp.eq.s32.totalorder %s13, 1
    %p52 = por %p50, %p51
    %p53 = scmp.ne.s32.totalorder %s42, %s43
    %p54 = scmp.eq.s32.totalorder %s13, 0
    %p55 = por %p53, %p54
    %p56 = scmp.ne.s32.totalorder %s42, %s43
    %p57 = scmp.eq.s32.totalorder %s14, 1
    %p58 = por %p56, %p57
    %p60 = scmp.ne.s32.totalorder %s43, %s59
    %p61 = scmp.eq.s32.totalorder %s14, 0
    %p62 = por %p60, %p61
    %s63 = ssub.s32 %s8, %s15
    %p64 = scmp.eq.s32.totalorder %s63, 0
    %s66 = sadd.s32 %s65, 1
    %s67 = scalar_select %p64, %s65, %s66
    %p70 = pneg %p64
    %p71 = scmp.eq.s32.totalorder %s8, 1
    %p72 = por %p70, %p71
    %p73 = scmp.ne.s32.totalorder %s65, %s68
    %p74 = scmp.eq.s32.totalorder %s8, 0
    %p75 = por %p73, %p74
    %p76 = scmp.ne.s32.totalorder %s65, %s68
    %p77 = scmp.eq.s32.totalorder %s13, 1
    %p78 = por %p76, %p77
    %p79 = scmp.ne.s32.totalorder %s68, %s69
    %p80 = scmp.eq.s32.totalorder %s13, 0
    %p81 = por %p79, %p80
    %p82 = scmp.ne.s32.totalorder %s68, %s69
    %p83 = scmp.eq.s32.totalorder %s14, 1
    %p84 = por %p82, %p83
    %p86 = scmp.ne.s32.totalorder %s69, %s85
    %p87 = scmp.eq.s32.totalorder %s14, 0
    %p88 = por %p86, %p87
    %p89 = scmp.le.s32.totalorder 1, %s8
    %p90 = scmp.lt.s32.totalorder %s8, 3
    %p91 = pnand %p89, %p90
    %p92 = pneg %p91
    // Predicated region
    $region9: #{_eca_forward.1} parent=5 // pred_check
      _
    $region10: #{_eca_forward.1} parent=5 // pred_check_branch
      %94 = sbr.rel (%p91) target = $region12
    $region11: #{_eca_forward.1} parent=5 // pred_region
      %s95 = ssub.s32 %s8, 1
      // Predicated region
      $region13: #{_eca_forward.1} parent=11 // pred_check
        %p96 = pneg %p29
      $region14: #{_eca_forward.1} parent=11 // pred_check_branch
        %98 = sbr.rel (%p96) target = $region16
      $region15: #{_eca_forward.1} parent=11 // pred_region
        _
      $region16: #{_eca_forward.1} parent=11 // pred_fallthru
        _
    $region12: #{_eca_forward.1} parent=5 // pred_fallthru
      _
    %p99 = scmp.lt.s32.totalorder %s8, 2
    // Predicated region
    $region17: #{_eca_forward.1} parent=5 // pred_check
      %p100 = pneg %p99
    $region18: #{_eca_forward.1} parent=5 // pred_check_branch
      %102 = sbr.rel (%p100) target = $region20
    $region19: #{_eca_forward.1} parent=5 // pred_region
      // Predicated region
      $region21: #{_eca_forward.1} parent=19 // pred_check
        %p103 = pneg %p49
      $region22: #{_eca_forward.1} parent=19 // pred_check_branch
        %105 = sbr.rel (%p103) target = $region24
      $region23: #{_eca_forward.1} parent=19 // pred_region
        %p106 = scmp.lt.s32.totalorder %s8, 1
        %s107 = scalar_select %p106, %s8, 1
        %s108 = smul.addr %s107, 2
        %s109 = smul.addr %s108, 4
        %s110 = scalar_lea.vmem %s1, %s109
      $region24: #{_eca_forward.1} parent=19 // pred_fallthru
        _
    $region20: #{_eca_forward.1} parent=5 // pred_fallthru
      _
    %p111 = scmp.le.s32.totalorder 1, %s8
    %p112 = scmp.lt.s32.totalorder %s8, 3
    %p113 = pnand %p111, %p112
    %p114 = pneg %p113
    // Predicated region
    $region25: #{_eca_forward.1} parent=5 // pred_check
      _
    $region26: #{_eca_forward.1} parent=5 // pred_check_branch
      %116 = sbr.rel (%p113) target = $region28
    $region27: #{_eca_forward.1} parent=5 // pred_region
      %s117 = ssub.s32 %s8, 1
      %p118 = pneg %p29
      %p119 = pneg %p26
      %p120 = scmp.lt.s32.totalorder %s13, 1
      %s121 = scalar_select %p120, %s13, 1
      %s122 = smul.addr %s121, 2
      %s123 = smul.addr %s122, 4
      %s124 = scalar_lea.vmem %s1, %s123
      %p125 = pneg %p55
      %p126 = pneg %p52
      %p127 = pneg %p81
      %p128 = pneg %p78
      %p129 = scmp.lt.s32.totalorder %s13, 1
      %s130 = scalar_select %p129, %s13, 1
      %s131 = smul.addr %s130, 2
      %s132 = smul.addr %s131, 4
      %s133 = scalar_lea.vmem %s2, %s132
      %p134 = scmp.lt.s32.totalorder %s13, 1
      %s135 = scalar_select %p134, %s13, 1
      %s136 = smul.addr %s135, 2
      %s137 = smul.addr %s136, 4
      %s138 = scalar_lea.vmem %s1, %s137
      %p139 = scmp.lt.s32.totalorder %s13, 1
      %s140 = scalar_select %p139, %s13, 1
      %s141 = smul.addr %s140, 2
      %s142 = smul.addr %s141, 4
      %s143 = scalar_lea.vmem %s2, %s142
      %144 = vst [vmem:[#allocation2] sm:$0xf] 0.0
      loop: start=0, step=1, limit=2
      $region29: #{_eca_forward.1} parent=27 // loop_pre_header
        _
      $region30: #{_eca_forward.1} parent=27 // loop_header
        %s146 = sphi 0, %s150
        %p147 = scmp.ge.s32.totalorder %s146, 2
      $region31: #{_eca_forward.1} parent=27 // loop_header_branch
        %149 = sbr.rel (%p147) target = $region35
      $region32: #{_eca_forward.1} parent=27 // loop_body
        %s151 = smul.u32 %s146, 128
        %v152 = vld [vmem:[#allocation2] sm:$0xf]
        %s153 = sshra.s32 %s151, 7
        %s154 = sand.u32 %s151, 127
        %s155 = smul.addr %s153, 4
        %s156 = scalar_lea.vmem %s138, %s155
        %v157 = vld [vmem:[%s156] sm:$0xf]
        %v158 = vadd.f32 %v152, %v157
        %159 = vst [vmem:[#allocation2] sm:$0xf] %v158
      $region33: #{_eca_forward.1} parent=27 // loop_footer
        %s150 = sadd.s32 1, %s146
      $region34: #{_eca_forward.1} parent=27 // loop_footer_branch
        %145 = sbr.rel target = $region30
      $region35: #{_eca_forward.1} parent=27 // loop_exit
        _
      %v160 = vld [vmem:[%s0] sm:$0xf]
      %v161 = vld [vmem:[#allocation2] sm:$0xf]
      %vm162 = vcmask 31744
      %v164 = vsel %vm162, %v160, 0
      %vm166 = vcmask 1043456
      %v168 = vsel %vm166, %v161, 0
      %170 = vmatprep.subr.mxu0 0.0
      %171 = vmatpush1.msra.mxu0 %v168
      %172 = vmatprep.subr.mxu0 0.0
      %173 = vmatpush1.msra.mxu0 0.0
      %174 = vmatprep.subr.mxu0 0.0
      %175 = vmatpush1.msra.mxu0 0.0
      %176 = vmatprep.subr.mxu0 0.0
      %177 = vmatpush1.msra.mxu0 0.0
      %178 = vmatprep.subr.mxu0 0.0
      %179 = vmatpush1.msra.mxu0 0.0
      %180 = vmatprep.subr.mxu0 0.0
      %181 = vmatpush1.msra.mxu0 0.0
      %182 = vmatprep.subr.mxu0 0.0
      %183 = vmatpush1.msra.mxu0 0.0
      %184 = vmatprep.subr.mxu0 0.0
      %185 = vmatpush1.msra.mxu0 0.0
      %186 = vmatprep.subr.mxu0 0.0
      %187 = vmatpush1.msra.mxu0 0.0
      %188 = vmatprep.subr.mxu0 0.0
      %189 = vmatpush1.msra.mxu0 0.0
      %190 = vmatprep.subr.mxu0 0.0
      %191 = vmatpush1.msra.mxu0 0.0
      %192 = vmatprep.subr.mxu0 0.0
      %193 = vmatpush1.msra.mxu0 0.0
      %194 = vmatprep.subr.mxu0 0.0
      %195 = vmatpush1.msra.mxu0 0.0
      %196 = vmatprep.subr.mxu0 0.0
      %197 = vmatpush1.msra.mxu0 0.0
      %198 = vmatprep.subr.mxu0 0.0
      %199 = vmatpush1.msra.mxu0 0.0
      %200 = vmatprep.subr.mxu0 0.0
      %201 = vmatpush1.msra.mxu0 0.0
      %202 = vmatprep.subr.mxu0 0.0
      %203 = vmatpush1.msra.mxu0 0.0
      %204 = vmatprep.subr.mxu0 0.0
      %205 = vmatpush1.msra.mxu0 0.0
      %206 = vmatprep.subr.mxu0 0.0
      %207 = vmatpush1.msra.mxu0 0.0
      %208 = vmatprep.subr.mxu0 0.0
      %209 = vmatpush1.msra.mxu0 0.0
      %210 = vmatprep.subr.mxu0 0.0
      %211 = vmatpush1.msra.mxu0 0.0
      %212 = vmatprep.subr.mxu0 0.0
      %213 = vmatpush1.msra.mxu0 0.0
      %214 = vmatprep.subr.mxu0 0.0
      %215 = vmatpush1.msra.mxu0 0.0
      %216 = vmatprep.subr.mxu0 0.0
      %217 = vmatpush1.msra.mxu0 0.0
      %218 = vmatprep.subr.mxu0 0.0
      %219 = vmatpush1.msra.mxu0 0.0
      %220 = vmatprep.subr.mxu0 0.0
      %221 = vmatpush1.msra.mxu0 0.0
      %222 = vmatprep.subr.mxu0 0.0
      %223 = vmatpush1.msra.mxu0 0.0
      %224 = vmatprep.subr.mxu0 0.0
      %225 = vmatpush1.msra.mxu0 0.0
      %226 = vmatprep.subr.mxu0 0.0
      %227 = vmatpush1.msra.mxu0 0.0
      %228 = vmatprep.subr.mxu0 0.0
      %229 = vmatpush1.msra.mxu0 0.0
      %230 = vmatprep.subr.mxu0 0.0
      %231 = vmatpush1.msra.mxu0 0.0
      %232 = vmatprep.subr.mxu0 0.0
      %233 = vmatpush1.msra.mxu0 0.0
      %234 = vmatprep.mubr.f32.mxu0 0.0
      %235 = vmatmul.mubr.f32.gmra.mrb[0].mxu0 %v164
      %v236 = vpop.f32.mrb[0].mxu0
      %v237 = vadd.f32 0.0, %v236
      %v238 = vpop.f32.mrb[0].mxu0
      %239 = vdwg.mxu0
      %v240 = vsel %vm166, %v237, 0.0
      %241 = vadd.xlane.f32.xlu0 %v240
      %v242 = vpop.xlane.xlu0 %241
      %v243 = vmul.f32 %v242, 0.00390625
      %v244 = vxor.u32 %v243, 2147483648
      %v245 = vmul.f32 %v244, 1.442695
      %v246 = vpow.pop %v245
      %v247 = vadd.f32 %v246, 1.0
      %v248 = vrcp.pop %v247
      %v249 = vmul.f32 1.0, %v248
      %v250 = vld [vmem:[%s138] sm:$0xff]
      %v253 = vunpack.c.l.s4 839922192
      %v254 = vunpack.c.0.s8 %v253
      %v255 = vlaneseq
      %v256 = vshrl.u32 %v255, 7
      %v257 = vsub.s32 %v254, %v256
      %v258 = vrot.slane %v249, %v257
      %v260 = vmul.f32 %v250, %v258
      %261 = vst [vmem:[%s143] sm:$0xff] %v260
      %p262 = scmp.lt.s32.totalorder %s13, 1
      %s263 = scalar_select %p262, %s13, 1
      %s264 = smul.addr %s263, 2
      %s265 = smul.addr %s264, 4
      %s266 = scalar_lea.vmem %s2, %s265
      // Predicated region
      $region36: #{_eca_forward.1} parent=27 // pred_check
        %p267 = pneg %p78
      $region37: #{_eca_forward.1} parent=27 // pred_check_branch
        %269 = sbr.rel (%p267) target = $region39
      $region38: #{_eca_forward.1} parent=27 // pred_region
        _
      $region39: #{_eca_forward.1} parent=27 // pred_fallthru
        _
    $region28: #{_eca_forward.1} parent=5 // pred_fallthru
      _
    %p270 = scmp.le.s32.totalorder 2, %s8
    // Predicated region
    $region40: #{_eca_forward.1} parent=5 // pred_check
      %p271 = pneg %p270
    $region41: #{_eca_forward.1} parent=5 // pred_check_branch
      %273 = sbr.rel (%p271) target = $region43
    $region42: #{_eca_forward.1} parent=5 // pred_region
      %s274 = ssub.s32 %s8, 2
      // Predicated region
      $region44: #{_eca_forward.1} parent=42 // pred_check
        %p275 = pneg %p84
      $region45: #{_eca_forward.1} parent=42 // pred_check_branch
        %277 = sbr.rel (%p275) target = $region47
      $region46: #{_eca_forward.1} parent=42 // pred_region
        %p278 = scmp.lt.s32.totalorder %s14, 1
        %s279 = scalar_select %p278, %s14, 1
        %s280 = smul.addr %s279, 2
        %s281 = smul.addr %s280, 4
        %s282 = scalar_lea.vmem %s2, %s281
      $region47: #{_eca_forward.1} parent=42 // pred_fallthru
        _
    $region43: #{_eca_forward.1} parent=5 // pred_fallthru
      _
  $region6: #{_eca_forward.1} parent=0 // loop_footer
    %s12 = sadd.s32 1, %s8
  $region7: #{_eca_forward.1} parent=0 // loop_footer_branch
    %7 = sbr.rel target = $region3
  $region8: #{_eca_forward.1} parent=0 // loop_exit
    _

</llo_original>
